<compile_context>
chip_gen: v5e
topology: v5e:2x2
jax: 0.10.0
libtpu: 0.0.40
codegen_flags: <defaults>
</compile_context>

<pallas_src>
import functools

import jax
import jax.numpy as jnp
from jax.experimental import pallas as pl
from jax.experimental.pallas import tpu as pltpu

N = 2            # batch (kernel works for any N; >=8 fills vreg sublanes)
L = 105          # input length  -> conv out 100 -> pool out 50 = 5*5*2 (fc in)
K = 6            # conv kernel size
LC = L - K + 1   # 100 (conv output length)
LP = LC // 2     # 50  (pooled / flattened features)
OUT = 2          # fc output features


def cnn_kernel(x_ref, cmat_ref, cb_ref, comb_ref, fcb_ref, o_ref):
    # x_ref:    (N, L)   VMEM
    # cmat_ref: (L, LC)  VMEM  banded Toeplitz conv matrix
    # cb_ref:   (1,)     SMEM  conv bias scalar
    # comb_ref: (LC, OUT) VMEM fused avgpool+fc matrix
    # fcb_ref:  (1, OUT) VMEM  fc bias
    # o_ref:    (N, OUT) VMEM
    xv = x_ref[...]

    # Conv1d(1,1,6) valid padding, as one MXU matmul, plus bias.
    conv = jnp.dot(xv, cmat_ref[...], preferred_element_type=jnp.float32)
    conv = conv + cb_ref[0]

    # ReLU
    r = jnp.maximum(conv, 0.0)

    # Fused AvgPool1d(2) + Linear(50, 2): one (100, 2) matmul + bias.
    out = jnp.dot(r, comb_ref[...], preferred_element_type=jnp.float32)
    o_ref[...] = out + fcb_ref[...]


@jax.jit
def cnn_net_forward(x_ncl, conv_w, conv_b, fc_w, fc_b):
    """x_ncl: (N, 1, L) f32. conv_w: (6,), conv_b: (1,), fc_w: (2, 50), fc_b: (2,)."""
    x2d = x_ncl[:, 0, :].astype(jnp.float32)                 # (N, L)

    # Banded Toeplitz matrix for the valid conv:
    #   conv_out[n, j] = sum_k x[n, j + k] * w[k]  =>  cmat[j + k, j] = w[k]
    i = jnp.arange(L)[:, None]                                # (L, 1)
    j = jnp.arange(LC)[None, :]                               # (1, LC)
    diff = i - j
    w32 = conv_w.astype(jnp.float32)
    cmat = jnp.where((diff >= 0) & (diff < K),
                     w32[jnp.clip(diff, 0, K - 1)], 0.0).astype(jnp.float32)  # (L, LC)

    # Fused AvgPool1d(2) + Linear: pooled = r @ pool_mat, out = pooled @ fc_w.T
    # => out = r @ (pool_mat @ fc_w.T); that combined matrix is simply
    #    0.5 * fc_w.T with each row repeated twice.  Shape (LC, OUT).
    combined = (0.5 * jnp.repeat(fc_w.T.astype(jnp.float32), 2, axis=0))      # (LC, OUT)
    fc_b2 = fc_b.reshape(1, OUT).astype(jnp.float32)                          # (1, OUT)

    return pl.pallas_call(
        cnn_kernel,
        out_shape=jax.ShapeDtypeStruct((x2d.shape[0], OUT), jnp.float32),
        in_specs=[
            pl.BlockSpec(memory_space=pltpu.MemorySpace.VMEM),   # x
            pl.BlockSpec(memory_space=pltpu.MemorySpace.VMEM),   # conv Toeplitz matrix
            pl.BlockSpec(memory_space=pltpu.MemorySpace.SMEM),   # conv bias
            pl.BlockSpec(memory_space=pltpu.MemorySpace.VMEM),   # fused pool+fc matrix
            pl.BlockSpec(memory_space=pltpu.MemorySpace.VMEM),   # fc bias
        ],
        out_specs=pl.BlockSpec(memory_space=pltpu.MemorySpace.VMEM),
    )(x2d, cmat, conv_b.astype(jnp.float32), combined, fc_b2)


def ref_forward(x_ncl, conv_w, conv_b, fc_w, fc_b):
    """Pure-JAX reference matching PyTorch CNN_net semantics."""
    xs = x_ncl[:, 0, :]                                  # (N, L)
    conv = sum(xs[:, k:k + LC] * conv_w[k] for k in range(K)) + conv_b[0]
    r = jnp.maximum(conv, 0.0)                           # ReLU
    pooled = r.reshape(xs.shape[0], LP, 2).mean(axis=-1)  # AvgPool1d(2)
    flat = pooled.reshape(xs.shape[0], LP)               # view(-1, 50)
    return flat @ fc_w.T + fc_b                          # Linear(50, 2)


if __name__ == "__main__":
    key = jax.random.PRNGKey(0)
    kx, k1, k2, k3, k4 = jax.random.split(key, 5)

    # Deterministic synthetic parameters (shapes from CNN_net.__init__).
    x = jax.random.normal(kx, (N, 1, L), dtype=jnp.float32)
    conv_w = jax.random.normal(k1, (K,), dtype=jnp.float32) * 0.4     # Conv1d(1,1,6) weight (squeezed)
    conv_b = jax.random.normal(k2, (1,), dtype=jnp.float32) * 0.1     # Conv1d bias
    fc_w = jax.random.normal(k3, (OUT, LP), dtype=jnp.float32) * 0.1  # Linear(50,2) weight
    fc_b = jax.random.normal(k4, (OUT,), dtype=jnp.float32) * 0.1     # Linear bias

    out = cnn_net_forward(x, conv_w, conv_b, fc_w, fc_b)
    out = jax.block_until_ready(out)

    expected = ref_forward(x, conv_w, conv_b, fc_w, fc_b)
    assert out.shape == (N, OUT)
    assert jnp.allclose(out, expected, atol=1e-4, rtol=1e-4), (out, expected)

    print("KERNEL_OK")
</pallas_src>

<mosaic_0001>
module attributes {stable_mosaic.version = 11 : i64} {
  func.func @cnn_kernel(%arg0: memref<2x105xf32, #tpu.memory_space<vmem>>, %arg1: memref<105x100xf32, #tpu.memory_space<vmem>>, %arg2: memref<1xf32, #tpu.memory_space<smem>>, %arg3: memref<100x2xf32, #tpu.memory_space<vmem>>, %arg4: memref<1x2xf32, #tpu.memory_space<vmem>>, %arg5: memref<2x2xf32, #tpu.memory_space<vmem>>) attributes {dimension_semantics = [], scalar_prefetch = 0 : i64, scratch_operands = 0 : i64, tpu.core_type = #tpu.core_type<tc>} {
    %c0 = arith.constant 0 : index
    %c0_0 = arith.constant 0 : index
    %0 = vector.load %arg0[%c0, %c0_0] : memref<2x105xf32, #tpu.memory_space<vmem>>, vector<2x105xf32>
    %c0_1 = arith.constant 0 : index
    %c0_2 = arith.constant 0 : index
    %1 = vector.load %arg1[%c0_1, %c0_2] : memref<105x100xf32, #tpu.memory_space<vmem>>, vector<105x100xf32>
    %cst = arith.constant dense<0.000000e+00> : vector<2x100xf32>
    %2 = tpu.matmul %0, %1, %cst {dimension_numbers = #tpu.dot_dimension_numbers<[1], [0], [0], [1], [0, 0, 1, 1], [], []>} : vector<2x105xf32>, vector<105x100xf32>, vector<2x100xf32> -> vector<2x100xf32>
    %c0_3 = arith.constant 0 : index
    %3 = memref.load %arg2[%c0_3] : memref<1xf32, #tpu.memory_space<smem>>
    %4 = vector.broadcast %3 : f32 to vector<2x100xf32>
    %5 = arith.addf %2, %4 : vector<2x100xf32>
    %cst_4 = arith.constant 0.000000e+00 : f32
    %6 = vector.broadcast %cst_4 : f32 to vector<2x100xf32>
    %7 = arith.maximumf %5, %6 : vector<2x100xf32>
    %c0_5 = arith.constant 0 : index
    %c0_6 = arith.constant 0 : index
    %8 = vector.load %arg3[%c0_5, %c0_6] : memref<100x2xf32, #tpu.memory_space<vmem>>, vector<100x2xf32>
    %cst_7 = arith.constant dense<0.000000e+00> : vector<2x2xf32>
    %9 = tpu.matmul %7, %8, %cst_7 {dimension_numbers = #tpu.dot_dimension_numbers<[1], [0], [0], [1], [0, 0, 1, 1], [], []>} : vector<2x100xf32>, vector<100x2xf32>, vector<2x2xf32> -> vector<2x2xf32>
    %c0_8 = arith.constant 0 : index
    %c0_9 = arith.constant 0 : index
    %10 = vector.load %arg4[%c0_8, %c0_9] : memref<1x2xf32, #tpu.memory_space<vmem>>, vector<1x2xf32>
    %11 = vector.broadcast %10 : vector<1x2xf32> to vector<2x2xf32>
    %12 = arith.addf %9, %11 : vector<2x2xf32>
    %c0_10 = arith.constant 0 : index
    %c0_11 = arith.constant 0 : index
    %13 = vector.load %arg5[%c0_10, %c0_11] : memref<2x2xf32, #tpu.memory_space<vmem>>, vector<2x2xf32>
    tpu.vector_store %arg5[%c0_10, %c0_11], %12 {strides = array<i32>} : memref<2x2xf32, #tpu.memory_space<vmem>>, vector<2x2xf32>,
    return
  }
}

</mosaic_0001>

<llo_original>
// kernel: cnn_net_forward.1
$region0: #{cnn_net_forward.1}
  #allocation0 [shape = 'u32[]', space=smem, size = 0x4, offset = 0x4, fixed_abs, tag = 'smem constant byte address 0x4 - core index']
  #allocation1 [shape = 'u32[72,128]{1,0:T(1,128)}', space=vmem, size = 0x9000, scoped, tag = 'internal scratch']
  #allocation2 [shape = 'f32[1]{0:T(128)S(6)}', space=smem, size = 0x200, scoped, tag = 'scoped memory for cnn_net_forward.1']
  %s0 = inlined_call_operand.vmem [shape: f32[2,105], index: 0, kind: input, shape index: {}]
  %s1 = inlined_call_operand.vmem [shape: f32[105,100], index: 1, kind: input, shape index: {}]
  %s2 = inlined_call_operand.<no memory space> [shape: f32[1], index: 2, kind: input, shape index: {}]
  %s3 = inlined_call_operand.vmem [shape: f32[100,2], index: 3, kind: input, shape index: {}]
  %s4 = inlined_call_operand.vmem [shape: f32[1,2], index: 4, kind: input, shape index: {}]
  %s5 = inlined_call_operand.hbm [shape: f32[2,2], index: 5, kind: output, shape index: {}]
  %s6 = sld [smem:[#allocation0]]
  $region30: #{cnn_net_forward.1} parent=0
    _
  %s8 = ssub.s32 1, %s6
  %s9 = scalar_select 0, %s8, %s6
  %10 = sst [smem:[#allocation2]] %s2
  $region1: #{cnn_net_forward.1} parent=0
    #allocation3 [shape = 'u8[1024]{0}', space=vmem, size = 0x400, scoped, tag = 'output window, operand 0, single buffered']
    #allocation4 [shape = 's32[1]{0}', space=sflag, size = 0x4, scoped, tag = 'scoped memory for cnn_net_forward.1']
    %11 = vsyncpa [#allocation4], 0
    // Predicated region
    $region2: #{cnn_net_forward.1} parent=1 // pred_check
      _
    $region3: #{cnn_net_forward.1} parent=1 // pred_check_branch
      %13 = sbr.rel (0) target = $region5
    $region4: #{cnn_net_forward.1} parent=1 // pred_region
      _
    $region5: #{cnn_net_forward.1} parent=1 // pred_fallthru
      _
    // Predicated region
    $region6: #{cnn_net_forward.1} parent=1 // pred_check
      _
    $region7: #{cnn_net_forward.1} parent=1 // pred_check_branch
      %15 = sbr.rel (0) target = $region9
    $region8: #{cnn_net_forward.1} parent=1 // pred_region
      _
    $region9: #{cnn_net_forward.1} parent=1 // pred_fallthru
      _
    // Predicated region
    $region10: #{cnn_net_forward.1} parent=1 // pred_check
      _
    $region11: #{cnn_net_forward.1} parent=1 // pred_check_branch
      %17 = sbr.rel (0) target = $region13
    $region12: #{cnn_net_forward.1} parent=1 // pred_region
      _
    $region13: #{cnn_net_forward.1} parent=1 // pred_fallthru
      _
    // Predicated region
    $region14: #{cnn_net_forward.1} parent=1 // pred_check
      _
    $region15: #{cnn_net_forward.1} parent=1 // pred_check_branch
      %19 = sbr.rel (0) target = $region17
    $region16: #{cnn_net_forward.1} parent=1 // pred_region
      _
    $region17: #{cnn_net_forward.1} parent=1 // pred_fallthru
      _
    // Predicated region
    $region18: #{cnn_net_forward.1} parent=1 // pred_check
      _
    $region19: #{cnn_net_forward.1} parent=1 // pred_check_branch
      %21 = sbr.rel (0) target = $region21
    $region20: #{cnn_net_forward.1} parent=1 // pred_region
      _
    $region21: #{cnn_net_forward.1} parent=1 // pred_fallthru
      _
    %v22 = vld [vmem:[%s0] sm:$0x3]
    %v23 = vld [vmem:[%s1] sm:$0xff]
    %v24 = vld [vmem:[%s1 + $0x8] sm:$0xff]
    %v25 = vld [vmem:[%s1 + $0x10] sm:$0xff]
    %v26 = vld [vmem:[%s1 + $0x18] sm:$0xff]
    %v27 = vld [vmem:[%s1 + $0x20] sm:$0xff]
    %v28 = vld [vmem:[%s1 + $0x28] sm:$0xff]
    %v29 = vld [vmem:[%s1 + $0x30] sm:$0xff]
    %v30 = vld [vmem:[%s1 + $0x38] sm:$0xff]
    %v31 = vld [vmem:[%s1 + $0x40] sm:$0xff]
    %v32 = vld [vmem:[%s1 + $0x48] sm:$0xff]
    %v33 = vld [vmem:[%s1 + $0x50] sm:$0xff]
    %v34 = vld [vmem:[%s1 + $0x58] sm:$0xff]
    %v35 = vld [vmem:[%s1 + $0x60] sm:$0xff]
    %v36 = vld [vmem:[%s1 + $0x68] sm:$0x1]
    %s37 = sld [smem:[#allocation2]]
    %v38 = vstv %s37
    %vm39 = vcmask 859136
    %v41 = vsel %vm39, %v22, 0
    %vm43 = vcmask 1040384
    %v45 = vsel %vm43, %v36, 0
    %47 = vmatpush.msra.mxu0 0.0
    %48 = vmatpush.msra.mxu0 0.0
    %49 = vmatpush.msra.mxu0 %v45
    %50 = vmatpush.msra.mxu0 %v35
    %51 = vmatpush.msra.mxu0 %v34
    %52 = vmatpush.msra.mxu0 %v33
    %53 = vmatpush.msra.mxu0 %v32
    %54 = vmatpush.msra.mxu0 %v31
    %55 = vmatpush.msra.mxu0 %v30
    %56 = vmatpush.msra.mxu0 %v29
    %57 = vmatpush.msra.mxu0 %v28
    %58 = vmatpush.msra.mxu0 %v27
    %59 = vmatpush.msra.mxu0 %v26
    %60 = vmatpush.msra.mxu0 %v25
    %61 = vmatpush.msra.mxu0 %v24
    %62 = vmatpush.msra.mxu0 %v23
    %63 = vmatmul.f32.gmra.mxu0 %v41
    %v64 = vpop.f32.mrf.mxu0
    %v65 = vadd.f32 %v38, %v64
    %66 = vdwg.mxu0
    %v67 = vmax.f32 %v65, 0.0
    %v68 = vld [vmem:[%s3] sm:$0xff]
    %v69 = vld [vmem:[%s3 + $0x8] sm:$0xff]
    %v70 = vld [vmem:[%s3 + $0x10] sm:$0xff]
    %v71 = vld [vmem:[%s3 + $0x18] sm:$0xff]
    %v72 = vld [vmem:[%s3 + $0x20] sm:$0xff]
    %v73 = vld [vmem:[%s3 + $0x28] sm:$0xff]
    %v74 = vld [vmem:[%s3 + $0x30] sm:$0xff]
    %v75 = vld [vmem:[%s3 + $0x38] sm:$0xff]
    %v76 = vld [vmem:[%s3 + $0x40] sm:$0xff]
    %v77 = vld [vmem:[%s3 + $0x48] sm:$0xff]
    %v78 = vld [vmem:[%s3 + $0x50] sm:$0xff]
    %v79 = vld [vmem:[%s3 + $0x58] sm:$0xff]
    %v80 = vld [vmem:[%s3 + $0x60] sm:$0xf]
    %v81 = vld [vmem:[%s4] sm:$0x1]
    %v83 = vperm.slane %v81, 0
    %vm85 = vcmask 818176
    %v87 = vsel %vm85, %v67, 0
    %vm89 = vcmask 1043456
    %v91 = vsel %vm89, %v80, 0
    %93 = vmatpush.msra.mxu0 0.0
    %94 = vmatpush.msra.mxu0 0.0
    %95 = vmatpush.msra.mxu0 0.0
    %96 = vmatpush.msra.mxu0 %v91
    %97 = vmatpush.msra.mxu0 %v79
    %98 = vmatpush.msra.mxu0 %v78
    %99 = vmatpush.msra.mxu0 %v77
    %100 = vmatpush.msra.mxu0 %v76
    %101 = vmatpush.msra.mxu0 %v75
    %102 = vmatpush.msra.mxu0 %v74
    %103 = vmatpush.msra.mxu0 %v73
    %104 = vmatpush.msra.mxu0 %v72
    %105 = vmatpush.msra.mxu0 %v71
    %106 = vmatpush.msra.mxu0 %v70
    %107 = vmatpush.msra.mxu0 %v69
    %108 = vmatpush.msra.mxu0 %v68
    %109 = vmatmul.f32.gmra.mxu0 %v87
    %v110 = vpop.f32.mrf.mxu0
    %v111 = vadd.f32 %v83, %v110
    %112 = vdwg.mxu0
    %vm113 = vcmask 9216
    %114 = vst.msk [vmem:[#allocation3] sm:$0x3] %vm113, %v111
    // Predicated region
    $region22: #{cnn_net_forward.1} parent=1 // pred_check
      _
    $region23: #{cnn_net_forward.1} parent=1 // pred_check_branch
      %116 = sbr.rel (0) target = $region25
    $region24: #{cnn_net_forward.1} parent=1 // pred_region
      %118 = vsyncadd [#allocation4], 0
      %s120 = sshll.u32 [#allocation3], 4
      %s121 = int_to_ptr.vmem [resolvable:$true] %s120
      %s122 = sshll.u32 %s5, 4
      %s123 = int_to_ptr.hbm [resolvable:$true] %s122
      %125 = dma.vmem_to_hbm [thread:$0]  %s121, 32, %s123, [#allocation4]
    $region25: #{cnn_net_forward.1} parent=1 // pred_fallthru
      _
    // Predicated region
    $region26: #{cnn_net_forward.1} parent=1 // pred_check
      _
    $region27: #{cnn_net_forward.1} parent=1 // pred_check_branch
      %127 = sbr.rel (0) target = $region29
    $region28: #{cnn_net_forward.1} parent=1 // pred_region
      %129 = dma.done [#allocation4], 32
    $region29: #{cnn_net_forward.1} parent=1 // pred_fallthru
      _
    %130 = vsyncpa [#allocation4], 1

</llo_original>
